<compile_context>
chip_gen: v7x
topology: tpu7x:2x2x1
jax: 0.10.0
libtpu: 0.0.40
codegen_flags: <defaults>
</compile_context>

<pallas_src>
import jax
import jax.numpy as jnp
from jax.experimental import pallas as pl
from jax.experimental.pallas import tpu as pltpu

_MIB = 1024 * 1024


# --------------------------------------------------------------------------------------
# Hardware queries (trace-time; safe fallbacks)
# --------------------------------------------------------------------------------------
def _vmem_capacity_bytes():
    try:
        cap = int(pltpu.get_tpu_info().vmem_capacity_bytes)
        if cap > 0:
            return cap
    except Exception:
        pass
    return 64 * _MIB  # conservative fallback (v7x per-TensorCore size)


def _num_tensorcores():
    try:
        info = pltpu.get_tpu_info()
        for attr in ("num_cores", "core_count", "num_tensorcores"):
            n = getattr(info, attr, None)
            if n:
                return int(n)
    except Exception:
        pass
    try:
        kind = jax.devices()[0].device_kind.lower()
        if "v7" in kind or "7x" in kind:
            return 2  # v7x: 2 TensorCores per chip
    except Exception:
        pass
    return 1


# --------------------------------------------------------------------------------------
# Kernels
# --------------------------------------------------------------------------------------
def _aff_fused_kernel(x_ref, r_ref,
                      wl1_ref, tl1_ref, wl2_ref, tl2_ref,
                      wg1_ref, tg1_ref, wg2_ref, tg2_ref,
                      o_ref):
    """(Bt, C, HW) slab per grid step; global branch computed in-kernel per batch."""
    wl1 = wl1_ref[...]            # (Ci, C) compute dtype, BN scale pre-folded
    tl1 = tl1_ref[...]            # (Ci, 1) f32 shift
    wl2 = wl2_ref[...]            # (C, Ci)
    tl2 = tl2_ref[...]            # (C, 1)
    wg1 = wg1_ref[...]            # (Ci, C) f32
    tg1 = tg1_ref[...]            # (Ci, 1)
    wg2 = wg2_ref[...]            # (C, Ci) f32
    tg2 = tg2_ref[...]            # (C, 1)

    bt = x_ref.shape[0]           # static block size -> unrolled Python loop
    for b in range(bt):
        x = x_ref[b]              # (C, HW) compute dtype (bf16 or f32)
        r = r_ref[b]
        xa = x + r

        # ---- local attention branch: per-pixel 1x1 convs on the MXU ----
        h = jnp.dot(wl1, xa, preferred_element_type=jnp.float32)            # (Ci, HW) f32
        h = jnp.maximum(h + tl1, 0.0)
        xl = jnp.dot(wl2, h.astype(x.dtype),
                     preferred_element_type=jnp.float32) + tl2              # (C, HW) f32

        # ---- global attention branch: avg pool -> tiny f32 matmuls ----
        m = jnp.mean(xa, axis=1, keepdims=True, dtype=jnp.float32)          # (C, 1) f32
        g = jnp.maximum(jnp.dot(wg1, m,
                                preferred_element_type=jnp.float32) + tg1, 0.0)
        xg = jnp.dot(wg2, g, preferred_element_type=jnp.float32) + tg2      # (C, 1)

        # ---- fusion: 2*x*wei + 2*res*(1-wei) == 2*(res + (x-res)*wei) ----
        wei = jax.nn.sigmoid(xl + xg)                                        # (C, HW) f32
        o_ref[b] = (2.0 * (r.astype(jnp.float32)
                           + (x.astype(jnp.float32) - r.astype(jnp.float32)) * wei)
                    ).astype(o_ref.dtype)


def _aff_tiled_kernel(x_ref, r_ref, xg_ref,
                      wl1_ref, tl1_ref, wl2_ref, tl2_ref,
                      o_ref):
    """(1, C, tHW) spatial tiles; global branch xg precomputed per batch (f32, (C,1))."""
    x = x_ref[0]                  # (C, tHW)
    r = r_ref[0]
    xa = x + r

    h = jnp.dot(wl1_ref[...], xa, preferred_element_type=jnp.float32)       # (Ci, tHW) f32
    h = jnp.maximum(h + tl1_ref[...], 0.0)
    xl = jnp.dot(wl2_ref[...], h.astype(x.dtype),
                 preferred_element_type=jnp.float32) + tl2_ref[...]         # (C, tHW) f32

    wei = jax.nn.sigmoid(xl + xg_ref[0])                                     # xg (C,1) broadcast
    o_ref[0] = (2.0 * (r.astype(jnp.float32)
                       + (x.astype(jnp.float32) - r.astype(jnp.float32)) * wei)
                ).astype(o_ref.dtype)


# --------------------------------------------------------------------------------------
# Wrapper
# --------------------------------------------------------------------------------------
def _pick_hw_tile(HW, per_col, budget_bytes, min_tiles=1):
    """Largest spatial tile (full HW or a multiple of 128) fitting the VMEM budget."""
    max_cols = max(128, budget_bytes // max(per_col, 1))
    if min_tiles > 1:
        max_cols = min(max_cols, max(128, HW // min_tiles))
    if HW <= max_cols:
        return HW                                   # fused path
    t = max(128, (int(max_cols) // 128) * 128)
    floor_cand = max(512, t // 2)                   # never collapse to tiny tiles
    cand = t
    while cand >= floor_cand:                       # prefer an exact divisor of HW
        if HW % cand == 0:
            return cand
        cand -= 128
    return t                                        # boundary block padded by Pallas


def _const_spec(shape):
    n = len(shape)
    return pl.BlockSpec(shape, lambda *_: (0,) * n)


def _global_branch_xla(x, r, wg1, tg1, wg2, tg2):
    """Per-batch global-attention branch in plain XLA (f32): (B,C,HW) -> (B,C,1)."""
    m = jnp.mean(x.astype(jnp.float32) + r.astype(jnp.float32), axis=2)      # (B, C)
    g = jnp.maximum(jnp.einsum('ic,bc->bi', wg1, m) + tg1[:, 0], 0.0)        # (B, Ci)
    xg = jnp.einsum('ci,bi->bc', wg2, g) + tg2[:, 0]                         # (B, C)
    return xg[:, :, None]                                                    # (B, C, 1) f32


def aff_forward(x_nchw, res_nchw, params, *, compute_dtype=jnp.bfloat16,
                hw_tile=None, batch_tile=None, vmem_budget_bytes=None):
    """x_nchw, res_nchw: (B, C, H, W). Returns (B, C, H, W) in compute_dtype."""
    B, C, H, W = x_nchw.shape
    HW = H * W
    Ci = params["wl1"].shape[0]

    # NCHW -> (B, C, HW) is a pure reshape of contiguous memory: no transpose traffic.
    x = x_nchw.reshape(B, C, HW).astype(compute_dtype)
    r = res_nchw.reshape(B, C, HW).astype(compute_dtype)

    # Local-branch weights in compute dtype (MXU), global-branch weights stay f32 (tiny).
    wl1 = params["wl1"].astype(compute_dtype)
    wl2 = params["wl2"].astype(compute_dtype)
    wg1 = params["wg1"].astype(jnp.float32)
    wg2 = params["wg2"].astype(jnp.float32)
    tl1, tl2 = params["tl1"], params["tl2"]          # f32 (Cout, 1) shifts (BN+bias folded)
    tg1, tg2 = params["tg1"], params["tg2"]

    itemsize = jnp.dtype(compute_dtype).itemsize
    vmem_cap = _vmem_capacity_bytes()
    num_cores = _num_tensorcores()

    # Generation-aware VMEM budget: ~100 MiB on 128 MiB parts, ~48 MiB on v7x (64 MiB).
    hard_cap = int(vmem_cap * 0.78)
    budget = int(vmem_cap * 0.72) if vmem_budget_bytes is None else int(vmem_budget_bytes)
    budget = max(24 * _MIB, min(budget, hard_cap))

    # Per spatial column: x/r/out double-buffered in compute dtype + f32 live temps
    # (h, xl, wei + fusion intermediates; h is Ci-tall, bounded by C here).
    per_col = C * (3 * 2 * itemsize + 8 * 4)
    per_slab = per_col * HW

    if hw_tile is None:
        # Only force >=2 spatial tiles where there are 2 TensorCores to feed (v7x).
        min_tiles = 2 if (num_cores >= 2 and B < 2) else 1
        hw_tile = _pick_hw_tile(HW, per_col, budget, min_tiles=min_tiles)
    hw_tile = min(int(hw_tile), HW)
    if hw_tile != HW and hw_tile % 128 != 0:
        raise ValueError("hw_tile must equal H*W or be a multiple of 128")

    if hw_tile == HW:
        # ---------------- fused path: global branch computed inside the kernel --------
        if batch_tile is None:
            bt_target = max(1, -(-512 // HW))              # >= ~512 lanes of work/step
            bt_cap = max(1, budget // max(per_slab, 1))    # VMEM bound
            if num_cores >= 2 and B >= 2:
                bt_cap = min(bt_cap, max(1, B // 2))       # keep both v7x TCs busy
            bt = max(1, min(B, bt_target, bt_cap))
            while B % bt != 0:                             # keep the grid exact
                bt -= 1
        else:
            bt = max(1, min(int(batch_tile), B))
            if B % bt != 0:
                raise ValueError("batch_tile must divide B")

        vmem_limit = int(min(hard_cap, max(32 * _MIB, bt * per_slab + 8 * _MIB)))
        slab_spec = pl.BlockSpec((bt, C, HW), lambda b: (b, 0, 0))
        out = pl.pallas_call(
            _aff_fused_kernel,
            out_shape=jax.ShapeDtypeStruct((B, C, HW), compute_dtype),
            grid=(B // bt,),
            in_specs=[
                slab_spec, slab_spec,
                _const_spec((Ci, C)), _const_spec((Ci, 1)),
                _const_spec((C, Ci)), _const_spec((C, 1)),
                _const_spec((Ci, C)), _const_spec((Ci, 1)),
                _const_spec((C, Ci)), _const_spec((C, 1)),
            ],
            out_specs=slab_spec,
            compiler_params=pltpu.CompilerParams(
                dimension_semantics=("parallel",),
                vmem_limit_bytes=vmem_limit),
        )(x, r, wl1, tl1, wl2, tl2, wg1, tg1, wg2, tg2)
    else:
        # ---------------- tiled path: global branch precomputed per batch -------------
        xg = _global_branch_xla(x, r, wg1, tg1, wg2, tg2)            # (B, C, 1) f32
        n_tiles = pl.cdiv(HW, hw_tile)
        vmem_limit = int(min(hard_cap, max(32 * _MIB, per_col * hw_tile + 8 * _MIB)))
        tile_spec = pl.BlockSpec((1, C, hw_tile), lambda b, t: (b, 0, t))
        out = pl.pallas_call(
            _aff_tiled_kernel,
            out_shape=jax.ShapeDtypeStruct((B, C, HW), compute_dtype),
            grid=(B, n_tiles),
            in_specs=[
                tile_spec, tile_spec,
                pl.BlockSpec((1, C, 1), lambda b, t: (b, 0, 0)),
                _const_spec((Ci, C)), _const_spec((Ci, 1)),
                _const_spec((C, Ci)), _const_spec((C, 1)),
            ],
            out_specs=tile_spec,
            compiler_params=pltpu.CompilerParams(
                dimension_semantics=("parallel", "parallel"),
                vmem_limit_bytes=vmem_limit),
        )(x, r, xg, wl1, tl1, wl2, tl2)

    return out.reshape(B, C, H, W)


# --------------------------------------------------------------------------------------
# Parameter folding / reference
# --------------------------------------------------------------------------------------
def fold_conv_bn(w_oi, bias, gamma, beta, mean, var, eps=1e-5):
    """Fold Conv2d(1x1) bias + BatchNorm (inference / running stats) into a scaled
    (Cout, Cin) matmul weight W' = s*W plus a per-out-channel shift column vector."""
    s = gamma / jnp.sqrt(var + eps)                        # (Cout,)
    w_folded = jnp.asarray(w_oi, jnp.float32) * s[:, None]
    shift = (bias - mean) * s + beta                       # (Cout,)
    return w_folded, shift.astype(jnp.float32)[:, None]


def make_params(key, C, r=4):
    Ci = C // r
    ks = jax.random.split(key, 4)

    def conv_bn_params(k, cin, cout):
        k0, k1, k2, k3, k4, k5 = jax.random.split(k, 6)
        w = jax.random.normal(k0, (cout, cin), jnp.float32) * 0.2   # Conv2d (O, I, 1, 1) squeezed
        b = jax.random.normal(k1, (cout,), jnp.float32) * 0.1
        gamma = 1.0 + 0.1 * jax.random.normal(k2, (cout,), jnp.float32)
        beta = 0.1 * jax.random.normal(k3, (cout,), jnp.float32)
        mean = 0.05 * jax.random.normal(k4, (cout,), jnp.float32)
        var = 0.5 + jax.random.uniform(k5, (cout,), jnp.float32)
        return fold_conv_bn(w, b, gamma, beta, mean, var)

    # TODO(synk): BatchNorm is implemented in inference mode (running stats);
    # training-mode batch statistics are not reproduced.
    wl1, tl1 = conv_bn_params(ks[0], C, Ci)
    wl2, tl2 = conv_bn_params(ks[1], Ci, C)
    wg1, tg1 = conv_bn_params(ks[2], C, Ci)
    wg2, tg2 = conv_bn_params(ks[3], Ci, C)
    return dict(wl1=wl1, tl1=tl1, wl2=wl2, tl2=tl2,
                wg1=wg1, tg1=tg1, wg2=wg2, tg2=tg2)


def aff_reference(x, res, p):
    """Pure-JAX f32 NCHW reference (uses the same exact-folded Conv+BN params)."""
    hp = jax.lax.Precision.HIGHEST

    def conv_bn(inp, w, t):
        y = jnp.einsum('oc,bchw->bohw', w, inp, precision=hp)
        return y + t[:, 0][None, :, None, None]

    xa = x + res
    xl = conv_bn(jnp.maximum(conv_bn(xa, p["wl1"], p["tl1"]), 0.0), p["wl2"], p["tl2"])
    pooled = jnp.mean(xa, axis=(2, 3), keepdims=True)
    xg = conv_bn(jnp.maximum(conv_bn(pooled, p["wg1"], p["tg1"]), 0.0), p["wg2"], p["tg2"])
    wei = jax.nn.sigmoid(xl + xg)
    return 2.0 * x * wei + 2.0 * res * (1.0 - wei)


# --------------------------------------------------------------------------------------
# Test
# --------------------------------------------------------------------------------------
if __name__ == "__main__":
    B, C, H, W = 2, 16, 16, 16
    key = jax.random.PRNGKey(0)
    kx, kr, kp = jax.random.split(key, 3)
    x = jax.random.normal(kx, (B, C, H, W), jnp.float32)
    residual = jax.random.normal(kr, (B, C, H, W), jnp.float32)
    params = make_params(kp, C, r=4)

    ref = aff_reference(x, residual, params)

    aff_jit = jax.jit(aff_forward,
                      static_argnames=("compute_dtype", "hw_tile", "batch_tile",
                                       "vmem_budget_bytes"))

    # 1) f32 compute path (fused kernel) -- tight semantic check.
    out_f32 = jax.block_until_ready(
        aff_jit(x, residual, params, compute_dtype=jnp.float32))
    assert out_f32.shape == (B, C, H, W)
    assert jnp.allclose(out_f32.astype(jnp.float32), ref, atol=2e-2, rtol=2e-2), \
        "f32 fused kernel mismatch vs reference"

    # 2) default bf16 compute path (fused kernel, batch-blocked) -- reduced-precision I/O.
    out_bf16 = jax.block_until_ready(aff_jit(x, residual, params))
    assert out_bf16.shape == (B, C, H, W)
    assert jnp.allclose(out_bf16.astype(jnp.float32), ref, atol=1e-1, rtol=1e-1), \
        "bf16 fused kernel mismatch vs reference"

    # 3) bf16 HW-tiled path (forced 128-wide spatial tiles, precomputed global branch).
    out_tiled = jax.block_until_ready(aff_jit(x, residual, params, hw_tile=128))
    assert out_tiled.shape == (B, C, H, W)
    assert jnp.allclose(out_tiled.astype(jnp.float32), ref, atol=1e-1, rtol=1e-1), \
        "bf16 tiled kernel mismatch vs reference"

    print("KERNEL_OK")
</pallas_src>

<mosaic_0001>
module attributes {stable_mosaic.version = 11 : i64} {
  func.func @_aff_fused_kernel(%arg0: i32, %arg1: memref<2x16x256xf32, #tpu.memory_space<vmem>>, %arg2: memref<2x16x256xf32, #tpu.memory_space<vmem>>, %arg3: memref<4x16xf32, #tpu.memory_space<vmem>>, %arg4: memref<4x1xf32, #tpu.memory_space<vmem>>, %arg5: memref<16x4xf32, #tpu.memory_space<vmem>>, %arg6: memref<16x1xf32, #tpu.memory_space<vmem>>, %arg7: memref<4x16xf32, #tpu.memory_space<vmem>>, %arg8: memref<4x1xf32, #tpu.memory_space<vmem>>, %arg9: memref<16x4xf32, #tpu.memory_space<vmem>>, %arg10: memref<16x1xf32, #tpu.memory_space<vmem>>, %arg11: memref<2x16x256xf32, #tpu.memory_space<vmem>>) attributes {dimension_semantics = [#tpu.dimension_semantics<parallel>], iteration_bounds = array<i64: 1>, scalar_prefetch = 0 : i64, scratch_operands = 0 : i64, tpu.core_type = #tpu.core_type<tc>, window_params = [{transform_indices = @transform_0, window_bounds = array<i64: 2, 16, 256>}, {transform_indices = @transform_1, window_bounds = array<i64: 2, 16, 256>}, {pipeline_mode = #tpu.pipeline_mode<synchronous>, transform_indices = @transform_2, window_bounds = array<i64: 4, 16>}, {pipeline_mode = #tpu.pipeline_mode<synchronous>, transform_indices = @transform_3, window_bounds = array<i64: 4, 1>}, {pipeline_mode = #tpu.pipeline_mode<synchronous>, transform_indices = @transform_4, window_bounds = array<i64: 16, 4>}, {pipeline_mode = #tpu.pipeline_mode<synchronous>, transform_indices = @transform_5, window_bounds = array<i64: 16, 1>}, {pipeline_mode = #tpu.pipeline_mode<synchronous>, transform_indices = @transform_6, window_bounds = array<i64: 4, 16>}, {pipeline_mode = #tpu.pipeline_mode<synchronous>, transform_indices = @transform_7, window_bounds = array<i64: 4, 1>}, {pipeline_mode = #tpu.pipeline_mode<synchronous>, transform_indices = @transform_8, window_bounds = array<i64: 16, 4>}, {pipeline_mode = #tpu.pipeline_mode<synchronous>, transform_indices = @transform_9, window_bounds = array<i64: 16, 1>}, {transform_indices = @transform_10, window_bounds = array<i64: 2, 16, 256>}]} {
    %c0 = arith.constant 0 : index
    %c0_0 = arith.constant 0 : index
    %0 = vector.load %arg3[%c0, %c0_0] : memref<4x16xf32, #tpu.memory_space<vmem>>, vector<4x16xf32>
    %c0_1 = arith.constant 0 : index
    %c0_2 = arith.constant 0 : index
    %1 = vector.load %arg4[%c0_1, %c0_2] : memref<4x1xf32, #tpu.memory_space<vmem>>, vector<4x1xf32>
    %c0_3 = arith.constant 0 : index
    %c0_4 = arith.constant 0 : index
    %2 = vector.load %arg5[%c0_3, %c0_4] : memref<16x4xf32, #tpu.memory_space<vmem>>, vector<16x4xf32>
    %c0_5 = arith.constant 0 : index
    %c0_6 = arith.constant 0 : index
    %3 = vector.load %arg6[%c0_5, %c0_6] : memref<16x1xf32, #tpu.memory_space<vmem>>, vector<16x1xf32>
    %c0_7 = arith.constant 0 : index
    %c0_8 = arith.constant 0 : index
    %4 = vector.load %arg7[%c0_7, %c0_8] : memref<4x16xf32, #tpu.memory_space<vmem>>, vector<4x16xf32>
    %c0_9 = arith.constant 0 : index
    %c0_10 = arith.constant 0 : index
    %5 = vector.load %arg8[%c0_9, %c0_10] : memref<4x1xf32, #tpu.memory_space<vmem>>, vector<4x1xf32>
    %c0_11 = arith.constant 0 : index
    %c0_12 = arith.constant 0 : index
    %6 = vector.load %arg9[%c0_11, %c0_12] : memref<16x4xf32, #tpu.memory_space<vmem>>, vector<16x4xf32>
    %c0_13 = arith.constant 0 : index
    %c0_14 = arith.constant 0 : index
    %7 = vector.load %arg10[%c0_13, %c0_14] : memref<16x1xf32, #tpu.memory_space<vmem>>, vector<16x1xf32>
    %c0_15 = arith.constant 0 : index
    %c0_16 = arith.constant 0 : index
    %c0_17 = arith.constant 0 : index
    %8 = vector.load %arg1[%c0_15, %c0_16, %c0_17] : memref<2x16x256xf32, #tpu.memory_space<vmem>>, vector<1x16x256xf32>
    %9 = vector.shape_cast %8 : vector<1x16x256xf32> to vector<16x256xf32>
    %c0_18 = arith.constant 0 : index
    %c0_19 = arith.constant 0 : index
    %c0_20 = arith.constant 0 : index
    %10 = vector.load %arg2[%c0_18, %c0_19, %c0_20] : memref<2x16x256xf32, #tpu.memory_space<vmem>>, vector<1x16x256xf32>
    %11 = vector.shape_cast %10 : vector<1x16x256xf32> to vector<16x256xf32>
    %12 = arith.addf %9, %11 : vector<16x256xf32>
    %cst = arith.constant dense<0.000000e+00> : vector<4x256xf32>
    %13 = tpu.matmul %0, %12, %cst {dimension_numbers = #tpu.dot_dimension_numbers<[1], [0], [0], [1], [0, 0, 1, 1], [], []>} : vector<4x16xf32>, vector<16x256xf32>, vector<4x256xf32> -> vector<4x256xf32>
    %14 = vector.broadcast %1 : vector<4x1xf32> to vector<4x256xf32>
    %15 = arith.addf %13, %14 : vector<4x256xf32>
    %cst_21 = arith.constant 0.000000e+00 : f32
    %16 = vector.broadcast %cst_21 : f32 to vector<4x256xf32>
    %17 = arith.maximumf %15, %16 : vector<4x256xf32>
    %cst_22 = arith.constant dense<0.000000e+00> : vector<16x256xf32>
    %18 = tpu.matmul %2, %17, %cst_22 {dimension_numbers = #tpu.dot_dimension_numbers<[1], [0], [0], [1], [0, 0, 1, 1], [], []>} : vector<16x4xf32>, vector<4x256xf32>, vector<16x256xf32> -> vector<16x256xf32>
    %19 = vector.broadcast %3 : vector<16x1xf32> to vector<16x256xf32>
    %20 = arith.addf %18, %19 : vector<16x256xf32>
    %cst_23 = arith.constant dense<0.000000e+00> : vector<16xf32>
    %21 = vector.multi_reduction <add>, %12, %cst_23 [1] : vector<16x256xf32> to vector<16xf32>
    %22 = vector.shape_cast %21 : vector<16xf32> to vector<16x1xf32>
    %cst_24 = arith.constant 2.560000e+02 : f32
    %23 = vector.broadcast %cst_24 : f32 to vector<16x1xf32>
    %24 = arith.divf %22, %23 : vector<16x1xf32>
    %cst_25 = arith.constant dense<0.000000e+00> : vector<4x1xf32>
    %25 = tpu.matmul %4, %24, %cst_25 {dimension_numbers = #tpu.dot_dimension_numbers<[1], [0], [0], [1], [0, 0, 1, 1], [], []>} : vector<4x16xf32>, vector<16x1xf32>, vector<4x1xf32> -> vector<4x1xf32>
    %26 = arith.addf %25, %5 : vector<4x1xf32>
    %cst_26 = arith.constant 0.000000e+00 : f32
    %27 = vector.broadcast %cst_26 : f32 to vector<4x1xf32>
    %28 = arith.maximumf %26, %27 : vector<4x1xf32>
    %cst_27 = arith.constant dense<0.000000e+00> : vector<16x1xf32>
    %29 = tpu.matmul %6, %28, %cst_27 {dimension_numbers = #tpu.dot_dimension_numbers<[1], [0], [0], [1], [0, 0, 1, 1], [], []>} : vector<16x4xf32>, vector<4x1xf32>, vector<16x1xf32> -> vector<16x1xf32>
    %30 = arith.addf %29, %7 : vector<16x1xf32>
    %31 = vector.broadcast %30 : vector<16x1xf32> to vector<16x256xf32>
    %32 = arith.addf %20, %31 : vector<16x256xf32>
    %33 = arith.negf %32 : vector<16x256xf32>
    %34 = math.exp %33 : vector<16x256xf32>
    %cst_28 = arith.constant 1.000000e+00 : f32
    %35 = vector.broadcast %cst_28 : f32 to vector<16x256xf32>
    %36 = arith.addf %35, %34 : vector<16x256xf32>
    %37 = arith.divf %35, %36 : vector<16x256xf32>
    %38 = arith.subf %9, %11 : vector<16x256xf32>
    %39 = arith.mulf %38, %37 : vector<16x256xf32>
    %40 = arith.addf %11, %39 : vector<16x256xf32>
    %cst_29 = arith.constant 2.000000e+00 : f32
    %41 = vector.broadcast %cst_29 : f32 to vector<16x256xf32>
    %42 = arith.mulf %41, %40 : vector<16x256xf32>
    %c0_30 = arith.constant 0 : index
    %c0_31 = arith.constant 0 : index
    %c0_32 = arith.constant 0 : index
    %43 = vector.load %arg11[%c0_30, %c0_31, %c0_32] : memref<2x16x256xf32, #tpu.memory_space<vmem>>, vector<1x16x256xf32>
    %44 = vector.shape_cast %43 : vector<1x16x256xf32> to vector<16x256xf32>
    %45 = vector.shape_cast %42 : vector<16x256xf32> to vector<1x16x256xf32>
    tpu.vector_store %arg11[%c0_30, %c0_31, %c0_32], %45 {strides = array<i32>} : memref<2x16x256xf32, #tpu.memory_space<vmem>>, vector<1x16x256xf32>,
    %c1 = arith.constant 1 : index
    %c0_33 = arith.constant 0 : index
    %c0_34 = arith.constant 0 : index
    %46 = vector.load %arg1[%c1, %c0_33, %c0_34] : memref<2x16x256xf32, #tpu.memory_space<vmem>>, vector<1x16x256xf32>
    %47 = vector.shape_cast %46 : vector<1x16x256xf32> to vector<16x256xf32>
    %c1_35 = arith.constant 1 : index
    %c0_36 = arith.constant 0 : index
    %c0_37 = arith.constant 0 : index
    %48 = vector.load %arg2[%c1_35, %c0_36, %c0_37] : memref<2x16x256xf32, #tpu.memory_space<vmem>>, vector<1x16x256xf32>
    %49 = vector.shape_cast %48 : vector<1x16x256xf32> to vector<16x256xf32>
    %50 = arith.addf %47, %49 : vector<16x256xf32>
    %cst_38 = arith.constant dense<0.000000e+00> : vector<4x256xf32>
    %51 = tpu.matmul %0, %50, %cst_38 {dimension_numbers = #tpu.dot_dimension_numbers<[1], [0], [0], [1], [0, 0, 1, 1], [], []>} : vector<4x16xf32>, vector<16x256xf32>, vector<4x256xf32> -> vector<4x256xf32>
    %52 = vector.broadcast %1 : vector<4x1xf32> to vector<4x256xf32>
    %53 = arith.addf %51, %52 : vector<4x256xf32>
    %cst_39 = arith.constant 0.000000e+00 : f32
    %54 = vector.broadcast %cst_39 : f32 to vector<4x256xf32>
    %55 = arith.maximumf %53, %54 : vector<4x256xf32>
    %cst_40 = arith.constant dense<0.000000e+00> : vector<16x256xf32>
    %56 = tpu.matmul %2, %55, %cst_40 {dimension_numbers = #tpu.dot_dimension_numbers<[1], [0], [0], [1], [0, 0, 1, 1], [], []>} : vector<16x4xf32>, vector<4x256xf32>, vector<16x256xf32> -> vector<16x256xf32>
    %57 = vector.broadcast %3 : vector<16x1xf32> to vector<16x256xf32>
    %58 = arith.addf %56, %57 : vector<16x256xf32>
    %cst_41 = arith.constant dense<0.000000e+00> : vector<16xf32>
    %59 = vector.multi_reduction <add>, %50, %cst_41 [1] : vector<16x256xf32> to vector<16xf32>
    %60 = vector.shape_cast %59 : vector<16xf32> to vector<16x1xf32>
    %cst_42 = arith.constant 2.560000e+02 : f32
    %61 = vector.broadcast %cst_42 : f32 to vector<16x1xf32>
    %62 = arith.divf %60, %61 : vector<16x1xf32>
    %cst_43 = arith.constant dense<0.000000e+00> : vector<4x1xf32>
    %63 = tpu.matmul %4, %62, %cst_43 {dimension_numbers = #tpu.dot_dimension_numbers<[1], [0], [0], [1], [0, 0, 1, 1], [], []>} : vector<4x16xf32>, vector<16x1xf32>, vector<4x1xf32> -> vector<4x1xf32>
    %64 = arith.addf %63, %5 : vector<4x1xf32>
    %cst_44 = arith.constant 0.000000e+00 : f32
    %65 = vector.broadcast %cst_44 : f32 to vector<4x1xf32>
    %66 = arith.maximumf %64, %65 : vector<4x1xf32>
    %cst_45 = arith.constant dense<0.000000e+00> : vector<16x1xf32>
    %67 = tpu.matmul %6, %66, %cst_45 {dimension_numbers = #tpu.dot_dimension_numbers<[1], [0], [0], [1], [0, 0, 1, 1], [], []>} : vector<16x4xf32>, vector<4x1xf32>, vector<16x1xf32> -> vector<16x1xf32>
    %68 = arith.addf %67, %7 : vector<16x1xf32>
    %69 = vector.broadcast %68 : vector<16x1xf32> to vector<16x256xf32>
    %70 = arith.addf %58, %69 : vector<16x256xf32>
    %71 = arith.negf %70 : vector<16x256xf32>
    %72 = math.exp %71 : vector<16x256xf32>
    %cst_46 = arith.constant 1.000000e+00 : f32
    %73 = vector.broadcast %cst_46 : f32 to vector<16x256xf32>
    %74 = arith.addf %73, %72 : vector<16x256xf32>
    %75 = arith.divf %73, %74 : vector<16x256xf32>
    %76 = arith.subf %47, %49 : vector<16x256xf32>
    %77 = arith.mulf %76, %75 : vector<16x256xf32>
    %78 = arith.addf %49, %77 : vector<16x256xf32>
    %cst_47 = arith.constant 2.000000e+00 : f32
    %79 = vector.broadcast %cst_47 : f32 to vector<16x256xf32>
    %80 = arith.mulf %79, %78 : vector<16x256xf32>
    %c1_48 = arith.constant 1 : index
    %c0_49 = arith.constant 0 : index
    %c0_50 = arith.constant 0 : index
    %81 = vector.load %arg11[%c1_48, %c0_49, %c0_50] : memref<2x16x256xf32, #tpu.memory_space<vmem>>, vector<1x16x256xf32>
    %82 = vector.shape_cast %81 : vector<1x16x256xf32> to vector<16x256xf32>
    %83 = vector.shape_cast %80 : vector<16x256xf32> to vector<1x16x256xf32>
    tpu.vector_store %arg11[%c1_48, %c0_49, %c0_50], %83 {strides = array<i32>} : memref<2x16x256xf32, #tpu.memory_space<vmem>>, vector<1x16x256xf32>,
    return
  }
  func.func @transform_0(%arg0: i32) -> (i32, i32, i32) {
    %c0_i32 = arith.constant 0 : i32
    %c0_i32_0 = arith.constant 0 : i32
    %c0_i32_1 = arith.constant 0 : i32
    return %arg0, %c0_i32, %c0_i32_0 : i32, i32, i32
  }
  func.func @transform_1(%arg0: i32) -> (i32, i32, i32) {
    %c0_i32 = arith.constant 0 : i32
    %c0_i32_0 = arith.constant 0 : i32
    %c0_i32_1 = arith.constant 0 : i32
    return %arg0, %c0_i32, %c0_i32_0 : i32, i32, i32
  }
  func.func @transform_2(%arg0: i32) -> (i32, i32) {
    %c0_i32 = arith.constant 0 : i32
    %c0_i32_0 = arith.constant 0 : i32
    %c0_i32_1 = arith.constant 0 : i32
    return %c0_i32, %c0_i32_0 : i32, i32
  }
  func.func @transform_3(%arg0: i32) -> (i32, i32) {
    %c0_i32 = arith.constant 0 : i32
    %c0_i32_0 = arith.constant 0 : i32
    %c0_i32_1 = arith.constant 0 : i32
    return %c0_i32, %c0_i32_0 : i32, i32
  }
  func.func @transform_4(%arg0: i32) -> (i32, i32) {
    %c0_i32 = arith.constant 0 : i32
    %c0_i32_0 = arith.constant 0 : i32
    %c0_i32_1 = arith.constant 0 : i32
    return %c0_i32, %c0_i32_0 : i32, i32
  }
  func.func @transform_5(%arg0: i32) -> (i32, i32) {
    %c0_i32 = arith.constant 0 : i32
    %c0_i32_0 = arith.constant 0 : i32
    %c0_i32_1 = arith.constant 0 : i32
    return %c0_i32, %c0_i32_0 : i32, i32
  }
  func.func @transform_6(%arg0: i32) -> (i32, i32) {
    %c0_i32 = arith.constant 0 : i32
    %c0_i32_0 = arith.constant 0 : i32
    %c0_i32_1 = arith.constant 0 : i32
    return %c0_i32, %c0_i32_0 : i32, i32
  }
  func.func @transform_7(%arg0: i32) -> (i32, i32) {
    %c0_i32 = arith.constant 0 : i32
    %c0_i32_0 = arith.constant 0 : i32
    %c0_i32_1 = arith.constant 0 : i32
    return %c0_i32, %c0_i32_0 : i32, i32
  }
  func.func @transform_8(%arg0: i32) -> (i32, i32) {
    %c0_i32 = arith.constant 0 : i32
    %c0_i32_0 = arith.constant 0 : i32
    %c0_i32_1 = arith.constant 0 : i32
    return %c0_i32, %c0_i32_0 : i32, i32
  }
  func.func @transform_9(%arg0: i32) -> (i32, i32) {
    %c0_i32 = arith.constant 0 : i32
    %c0_i32_0 = arith.constant 0 : i32
    %c0_i32_1 = arith.constant 0 : i32
    return %c0_i32, %c0_i32_0 : i32, i32
  }
  func.func @transform_10(%arg0: i32) -> (i32, i32, i32) {
    %c0_i32 = arith.constant 0 : i32
    %c0_i32_0 = arith.constant 0 : i32
    %c0_i32_1 = arith.constant 0 : i32
    return %arg0, %c0_i32, %c0_i32_0 : i32, i32, i32
  }
}

</mosaic_0001>

<llo_original>
// kernel: aff_forward.1
$region0: #{aff_forward.1}
  #allocation0 [shape = 'u32[]', space=smem, size = 0x4, offset = 0x4, fixed_abs, tag = 'smem constant byte address 0x4 - core index']
  #allocation1 [shape = 'u32[144,128]{1,0:T(1,128)}', space=vmem, size = 0x12000, scoped, tag = 'internal scratch']
  %s0 = inlined_call_operand.vmem [shape: f32[2,16,256], index: 0, kind: input, shape index: {}]
  %s1 = inlined_call_operand.vmem [shape: f32[2,16,256], index: 1, kind: input, shape index: {}]
  %s2 = inlined_call_operand.vmem [shape: f32[4,16], index: 2, kind: input, shape index: {}]
  %s3 = inlined_call_operand.vmem [shape: f32[4,1], index: 3, kind: input, shape index: {}]
  %s4 = inlined_call_operand.vmem [shape: f32[16,4], index: 4, kind: input, shape index: {}]
  %s5 = inlined_call_operand.vmem [shape: f32[16,1], index: 5, kind: input, shape index: {}]
  %s6 = inlined_call_operand.vmem [shape: f32[4,16], index: 6, kind: input, shape index: {}]
  %s7 = inlined_call_operand.vmem [shape: f32[4,1], index: 7, kind: input, shape index: {}]
  %s8 = inlined_call_operand.vmem [shape: f32[16,4], index: 8, kind: input, shape index: {}]
  %s9 = inlined_call_operand.vmem [shape: f32[16,1], index: 9, kind: input, shape index: {}]
  %s10 = inlined_call_operand.vmem [shape: f32[2,16,256], index: 10, kind: output, shape index: {}]
  %s11 = sld [smem:[#allocation0]]
  $region50: #{aff_forward.1} parent=0
    _
  %s13 = ssub.s32 1, %s11
  %s14 = scalar_select 0, %s13, %s11
  // Predicated region
  $region2: #{aff_forward.1} parent=0 // pred_check
    _
  $region3: #{aff_forward.1} parent=0 // pred_check_branch
    %16 = sbr.rel (0) target = $region5
  $region4: #{aff_forward.1} parent=0 // pred_region
    _
  $region5: #{aff_forward.1} parent=0 // pred_fallthru
    _
  // Predicated region
  $region6: #{aff_forward.1} parent=0 // pred_check
    _
  $region7: #{aff_forward.1} parent=0 // pred_check_branch
    %18 = sbr.rel (0) target = $region9
  $region8: #{aff_forward.1} parent=0 // pred_region
    _
  $region9: #{aff_forward.1} parent=0 // pred_fallthru
    _
  // Predicated region
  $region10: #{aff_forward.1} parent=0 // pred_check
    _
  $region11: #{aff_forward.1} parent=0 // pred_check_branch
    %20 = sbr.rel (0) target = $region13
  $region12: #{aff_forward.1} parent=0 // pred_region
    _
  $region13: #{aff_forward.1} parent=0 // pred_fallthru
    _
  // Predicated region
  $region14: #{aff_forward.1} parent=0 // pred_check
    _
  $region15: #{aff_forward.1} parent=0 // pred_check_branch
    %22 = sbr.rel (0) target = $region17
  $region16: #{aff_forward.1} parent=0 // pred_region
    _
  $region17: #{aff_forward.1} parent=0 // pred_fallthru
    _
  // Predicated region
  $region18: #{aff_forward.1} parent=0 // pred_check
    _
  $region19: #{aff_forward.1} parent=0 // pred_check_branch
    %24 = sbr.rel (0) target = $region21
  $region20: #{aff_forward.1} parent=0 // pred_region
    _
  $region21: #{aff_forward.1} parent=0 // pred_fallthru
    _
  // Predicated region
  $region22: #{aff_forward.1} parent=0 // pred_check
    _
  $region23: #{aff_forward.1} parent=0 // pred_check_branch
    %26 = sbr.rel (0) target = $region25
  $region24: #{aff_forward.1} parent=0 // pred_region
    _
  $region25: #{aff_forward.1} parent=0 // pred_fallthru
    _
  // Predicated region
  $region26: #{aff_forward.1} parent=0 // pred_check
    _
  $region27: #{aff_forward.1} parent=0 // pred_check_branch
    %28 = sbr.rel (0) target = $region29
  $region28: #{aff_forward.1} parent=0 // pred_region
    _
  $region29: #{aff_forward.1} parent=0 // pred_fallthru
    _
  // Predicated region
  $region30: #{aff_forward.1} parent=0 // pred_check
    _
  $region31: #{aff_forward.1} parent=0 // pred_check_branch
    %30 = sbr.rel (0) target = $region33
  $region32: #{aff_forward.1} parent=0 // pred_region
    _
  $region33: #{aff_forward.1} parent=0 // pred_fallthru
    _
  // Predicated region
  $region34: #{aff_forward.1} parent=0 // pred_check
    _
  $region35: #{aff_forward.1} parent=0 // pred_check_branch
    %32 = sbr.rel (0) target = $region37
  $region36: #{aff_forward.1} parent=0 // pred_region
    _
  $region37: #{aff_forward.1} parent=0 // pred_fallthru
    _
  // Predicated region
  $region38: #{aff_forward.1} parent=0 // pred_check
    _
  $region39: #{aff_forward.1} parent=0 // pred_check_branch
    %34 = sbr.rel (0) target = $region41
  $region40: #{aff_forward.1} parent=0 // pred_region
    _
  $region41: #{aff_forward.1} parent=0 // pred_fallthru
    _
  %v35 = vld [vmem:[%s2] sm:$0xf]
  %v36 = vld [vmem:[%s3] sm:$0xf]
  %v37 = vld [vmem:[%s4] sm:$0xff]
  %v38 = vld [vmem:[%s4 + $0x8] sm:$0xff]
  %v39 = vld [vmem:[%s5] sm:$0xff]
  %v40 = vld [vmem:[%s5 + $0x8] sm:$0xff]
  %v41 = vld [vmem:[%s6] sm:$0xf]
  %v42 = vld [vmem:[%s7] sm:$0xf]
  %v43 = vld [vmem:[%s8] sm:$0xff]
  %v44 = vld [vmem:[%s8 + $0x8] sm:$0xff]
  %v45 = vld [vmem:[%s9] sm:$0xff]
  %v46 = vld [vmem:[%s9 + $0x8] sm:$0xff]
  %v47 = vld [vmem:[%s0] sm:$0xff]
  %v48 = vld [vmem:[%s0 + $0x8] sm:$0xff]
  %v49 = vld [vmem:[%s0 + $0x10] sm:$0xff]
  %v50 = vld [vmem:[%s0 + $0x18] sm:$0xff]
  %v51 = vld [vmem:[%s1] sm:$0xff]
  %v52 = vld [vmem:[%s1 + $0x8] sm:$0xff]
  %v53 = vld [vmem:[%s1 + $0x10] sm:$0xff]
  %v54 = vld [vmem:[%s1 + $0x18] sm:$0xff]
  %v55 = vadd.f32 %v47, %v51
  %v56 = vadd.f32 %v48, %v52
  %v57 = vadd.f32 %v49, %v53
  %v58 = vadd.f32 %v50, %v54
  %60 = vset.pattern.permute.xlu0 0
  %61 = vperm.xlu0 %60, %v36
  %v62 = vpop.permute.xlu0 %61
  %vm64 = vcmask 130048
  %v66 = vsel %vm64, %v35, 0
  %68 = vmatprep.subr.mxu0 %v56
  %69 = vmatpush1.msra.mxu0 %v55
  %70 = vmatprep.subr.mxu0 %v58
  %71 = vmatpush1.msra.mxu0 %v57
  %72 = vmatprep.subr.mxu0 0.0
  %73 = vmatpush1.msra.mxu0 0.0
  %74 = vmatprep.subr.mxu0 0.0
  %75 = vmatpush1.msra.mxu0 0.0
  %76 = vmatprep.subr.mxu0 0.0
  %77 = vmatpush1.msra.mxu0 0.0
  %78 = vmatprep.subr.mxu0 0.0
  %79 = vmatpush1.msra.mxu0 0.0
  %80 = vmatprep.subr.mxu0 0.0
  %81 = vmatpush1.msra.mxu0 0.0
  %82 = vmatprep.subr.mxu0 0.0
  %83 = vmatpush1.msra.mxu0 0.0
  %84 = vmatprep.subr.mxu0 0.0
  %85 = vmatpush1.msra.mxu0 0.0
  %86 = vmatprep.subr.mxu0 0.0
  %87 = vmatpush1.msra.mxu0 0.0
  %88 = vmatprep.subr.mxu0 0.0
  %89 = vmatpush1.msra.mxu0 0.0
  %90 = vmatprep.subr.mxu0 0.0
  %91 = vmatpush1.msra.mxu0 0.0
  %92 = vmatprep.subr.mxu0 0.0
  %93 = vmatpush1.msra.mxu0 0.0
  %94 = vmatprep.subr.mxu0 0.0
  %95 = vmatpush1.msra.mxu0 0.0
  %96 = vmatprep.subr.mxu0 0.0
  %97 = vmatpush1.msra.mxu0 0.0
  %98 = vmatprep.subr.mxu0 0.0
  %99 = vmatpush1.msra.mxu0 0.0
  %100 = vmatprep.subr.mxu0 0.0
  %101 = vmatpush1.msra.mxu0 0.0
  %102 = vmatprep.subr.mxu0 0.0
  %103 = vmatpush1.msra.mxu0 0.0
  %104 = vmatprep.subr.mxu0 0.0
  %105 = vmatpush1.msra.mxu0 0.0
  %106 = vmatprep.subr.mxu0 0.0
  %107 = vmatpush1.msra.mxu0 0.0
  %108 = vmatprep.subr.mxu0 0.0
  %109 = vmatpush1.msra.mxu0 0.0
  %110 = vmatprep.subr.mxu0 0.0
  %111 = vmatpush1.msra.mxu0 0.0
  %112 = vmatprep.subr.mxu0 0.0
  %113 = vmatpush1.msra.mxu0 0.0
  %114 = vmatprep.subr.mxu0 0.0
  %115 = vmatpush1.msra.mxu0 0.0
  %116 = vmatprep.subr.mxu0 0.0
  %117 = vmatpush1.msra.mxu0 0.0
  %118 = vmatprep.subr.mxu0 0.0
  %119 = vmatpush1.msra.mxu0 0.0
  %120 = vmatprep.subr.mxu0 0.0
  %121 = vmatpush1.msra.mxu0 0.0
  %122 = vmatprep.subr.mxu0 0.0
  %123 = vmatpush1.msra.mxu0 0.0
  %124 = vmatprep.subr.mxu0 0.0
  %125 = vmatpush1.msra.mxu0 0.0
  %126 = vmatprep.subr.mxu0 0.0
  %127 = vmatpush1.msra.mxu0 0.0
  %128 = vmatprep.subr.mxu0 0.0
  %129 = vmatpush1.msra.mxu0 0.0
  %130 = vmatprep.subr.mxu0 0.0
  %131 = vmatpush1.msra.mxu0 0.0
  %132 = vmatprep.mubr.f32.mxu0 0.0
  %133 = vmatmul.mubr.f32.gmra.mrb[0].mxu0 %v66
  %v134 = vpop.f32.mrb[0].mxu0
  %v135 = vadd.f32 %v62, %v134
  %v136 = vpop.f32.mrb[0].mxu0
  %v137 = vadd.f32 %v62, %v136
  %138 = vdwg.mxu0
  %v139 = vmax.f32 %v135, 0.0
  %v140 = vmax.f32 %v137, 0.0
  %142 = vset.pattern.permute.xlu0 0
  %143 = vperm.xlu0 %142, %v39
  %v144 = vpop.permute.xlu0 %143
  %147 = vset.pattern.permute.xlu0 0
  %148 = vperm.xlu0 %147, %v40
  %v149 = vpop.permute.xlu0 %148
  %vm151 = vcmask 31744
  %v153 = vsel %vm151, %v37, 0
  %v156 = vsel %vm151, %v38, 0
  %vm158 = vcmask 1043456
  %v160 = vsel %vm158, %v139, 0
  %v163 = vsel %vm158, %v140, 0
  %165 = vmatprep.subr.mxu0 %v163
  %166 = vmatpush1.msra.mxu0 %v160
  %167 = vmatprep.subr.mxu0 0.0
  %168 = vmatpush1.msra.mxu0 0.0
  %169 = vmatprep.subr.mxu0 0.0
  %170 = vmatpush1.msra.mxu0 0.0
  %171 = vmatprep.subr.mxu0 0.0
  %172 = vmatpush1.msra.mxu0 0.0
  %173 = vmatprep.subr.mxu0 0.0
  %174 = vmatpush1.msra.mxu0 0.0
  %175 = vmatprep.subr.mxu0 0.0
  %176 = vmatpush1.msra.mxu0 0.0
  %177 = vmatprep.subr.mxu0 0.0
  %178 = vmatpush1.msra.mxu0 0.0
  %179 = vmatprep.subr.mxu0 0.0
  %180 = vmatpush1.msra.mxu0 0.0
  %181 = vmatprep.subr.mxu0 0.0
  %182 = vmatpush1.msra.mxu0 0.0
  %183 = vmatprep.subr.mxu0 0.0
  %184 = vmatpush1.msra.mxu0 0.0
  %185 = vmatprep.subr.mxu0 0.0
  %186 = vmatpush1.msra.mxu0 0.0
  %187 = vmatprep.subr.mxu0 0.0
  %188 = vmatpush1.msra.mxu0 0.0
  %189 = vmatprep.subr.mxu0 0.0
  %190 = vmatpush1.msra.mxu0 0.0
  %191 = vmatprep.subr.mxu0 0.0
  %192 = vmatpush1.msra.mxu0 0.0
  %193 = vmatprep.subr.mxu0 0.0
  %194 = vmatpush1.msra.mxu0 0.0
  %195 = vmatprep.subr.mxu0 0.0
  %196 = vmatpush1.msra.mxu0 0.0
  %197 = vmatprep.subr.mxu0 0.0
  %198 = vmatpush1.msra.mxu0 0.0
  %199 = vmatprep.subr.mxu0 0.0
  %200 = vmatpush1.msra.mxu0 0.0
  %201 = vmatprep.subr.mxu0 0.0
  %202 = vmatpush1.msra.mxu0 0.0
  %203 = vmatprep.subr.mxu0 0.0
  %204 = vmatpush1.msra.mxu0 0.0
  %205 = vmatprep.subr.mxu0 0.0
  %206 = vmatpush1.msra.mxu0 0.0
  %207 = vmatprep.subr.mxu0 0.0
  %208 = vmatpush1.msra.mxu0 0.0
  %209 = vmatprep.subr.mxu0 0.0
  %210 = vmatpush1.msra.mxu0 0.0
  %211 = vmatprep.subr.mxu0 0.0
  %212 = vmatpush1.msra.mxu0 0.0
  %213 = vmatprep.subr.mxu0 0.0
  %214 = vmatpush1.msra.mxu0 0.0
  %215 = vmatprep.subr.mxu0 0.0
  %216 = vmatpush1.msra.mxu0 0.0
  %217 = vmatprep.subr.mxu0 0.0
  %218 = vmatpush1.msra.mxu0 0.0
  %219 = vmatprep.subr.mxu0 0.0
  %220 = vmatpush1.msra.mxu0 0.0
  %221 = vmatprep.subr.mxu0 0.0
  %222 = vmatpush1.msra.mxu0 0.0
  %223 = vmatprep.subr.mxu0 0.0
  %224 = vmatpush1.msra.mxu0 0.0
  %225 = vmatprep.subr.mxu0 0.0
  %226 = vmatpush1.msra.mxu0 0.0
  %227 = vmatprep.subr.mxu0 0.0
  %228 = vmatpush1.msra.mxu0 0.0
  %229 = vmatprep.mubr.f32.mxu0 0.0
  %230 = vmatmul.mubr.f32.gmra.mrb[0].mxu0 %v153
  %v231 = vpop.f32.mrb[0].mxu0
  %v232 = vadd.f32 %v144, %v231
  %v233 = vpop.f32.mrb[0].mxu0
  %v234 = vadd.f32 %v144, %v233
  %235 = vmatprep.mubr.f32.mxu0 0.0
  %236 = vmatmul.mubr.f32.gmra.mrb[0].mxu0 %v156
  %v237 = vpop.f32.mrb[0].mxu0
  %v238 = vadd.f32 %v149, %v237
  %v239 = vpop.f32.mrb[0].mxu0
  %v240 = vadd.f32 %v149, %v239
  %241 = vdwg.mxu0
  %v242 = vadd.f32 %v55, %v56
  %243 = vadd.xlane.f32.xlu0 %v242
  %v244 = vpop.xlane.xlu0 %243
  %v245 = vadd.f32 %v57, %v58
  %246 = vadd.xlane.f32.xlu0 %v245
  %v247 = vpop.xlane.xlu0 %246
  %v248 = vrcp.pop 256.0
  %v249 = vmul.f32 %v244, %v248
  %v250 = vmul.f32 %v247, %v248
  %v252 = vsel %vm64, %v41, 0
  %254 = vmatprep.subr.mxu0 0.0
  %255 = vmatpush1.msra.mxu0 %v249
  %256 = vmatprep.subr.mxu0 0.0
  %257 = vmatpush1.msra.mxu0 %v250
  %258 = vmatprep.subr.mxu0 0.0
  %259 = vmatpush1.msra.mxu0 0.0
  %260 = vmatprep.subr.mxu0 0.0
  %261 = vmatpush1.msra.mxu0 0.0
  %262 = vmatprep.subr.mxu0 0.0
  %263 = vmatpush1.msra.mxu0 0.0
  %264 = vmatprep.subr.mxu0 0.0
  %265 = vmatpush1.msra.mxu0 0.0
  %266 = vmatprep.subr.mxu0 0.0
  %267 = vmatpush1.msra.mxu0 0.0
  %268 = vmatprep.subr.mxu0 0.0
  %269 = vmatpush1.msra.mxu0 0.0
  %270 = vmatprep.subr.mxu0 0.0
  %271 = vmatpush1.msra.mxu0 0.0
  %272 = vmatprep.subr.mxu0 0.0
  %273 = vmatpush1.msra.mxu0 0.0
  %274 = vmatprep.subr.mxu0 0.0
  %275 = vmatpush1.msra.mxu0 0.0
  %276 = vmatprep.subr.mxu0 0.0
  %277 = vmatpush1.msra.mxu0 0.0
  %278 = vmatprep.subr.mxu0 0.0
  %279 = vmatpush1.msra.mxu0 0.0
  %280 = vmatprep.subr.mxu0 0.0
  %281 = vmatpush1.msra.mxu0 0.0
  %282 = vmatprep.subr.mxu0 0.0
  %283 = vmatpush1.msra.mxu0 0.0
  %284 = vmatprep.subr.mxu0 0.0
  %285 = vmatpush1.msra.mxu0 0.0
  %286 = vmatprep.subr.mxu0 0.0
  %287 = vmatpush1.msra.mxu0 0.0
  %288 = vmatprep.subr.mxu0 0.0
  %289 = vmatpush1.msra.mxu0 0.0
  %290 = vmatprep.subr.mxu0 0.0
  %291 = vmatpush1.msra.mxu0 0.0
  %292 = vmatprep.subr.mxu0 0.0
  %293 = vmatpush1.msra.mxu0 0.0
  %294 = vmatprep.subr.mxu0 0.0
  %295 = vmatpush1.msra.mxu0 0.0
  %296 = vmatprep.subr.mxu0 0.0
  %297 = vmatpush1.msra.mxu0 0.0
  %298 = vmatprep.subr.mxu0 0.0
  %299 = vmatpush1.msra.mxu0 0.0
  %300 = vmatprep.subr.mxu0 0.0
  %301 = vmatpush1.msra.mxu0 0.0
  %302 = vmatprep.subr.mxu0 0.0
  %303 = vmatpush1.msra.mxu0 0.0
  %304 = vmatprep.subr.mxu0 0.0
  %305 = vmatpush1.msra.mxu0 0.0
  %306 = vmatprep.subr.mxu0 0.0
  %307 = vmatpush1.msra.mxu0 0.0
  %308 = vmatprep.subr.mxu0 0.0
  %309 = vmatpush1.msra.mxu0 0.0
  %310 = vmatprep.subr.mxu0 0.0
  %311 = vmatpush1.msra.mxu0 0.0
  %312 = vmatprep.subr.mxu0 0.0
  %313 = vmatpush1.msra.mxu0 0.0
  %314 = vmatprep.subr.mxu0 0.0
  %315 = vmatpush1.msra.mxu0 0.0
  %316 = vmatprep.subr.mxu0 0.0
  %317 = vmatpush1.msra.mxu0 0.0
  %318 = vmatprep.mubr.f32.mxu0 0.0
  %319 = vmatmul.mubr.f32.gmra.mrb[0].mxu0 %v252
  %v320 = vpop.f32.mrb[0].mxu0
  %v321 = vadd.f32 %v42, %v320
  %v322 = vpop.f32.mrb[0].mxu0
  %323 = vdwg.mxu0
  %v324 = vmax.f32 %v321, 0.0
  %v326 = vsel %vm151, %v43, 0
  %v329 = vsel %vm151, %v44, 0
  %v332 = vsel %vm158, %v324, 0
  %334 = vmatprep.subr.mxu0 0.0
  %335 = vmatpush1.msra.mxu0 %v332
  %336 = vmatprep.subr.mxu0 0.0
  %337 = vmatpush1.msra.mxu0 0.0
  %338 = vmatprep.subr.mxu0 0.0
  %339 = vmatpush1.msra.mxu0 0.0
  %340 = vmatprep.subr.mxu0 0.0
  %341 = vmatpush1.msra.mxu0 0.0
  %342 = vmatprep.subr.mxu0 0.0
  %343 = vmatpush1.msra.mxu0 0.0
  %344 = vmatprep.subr.mxu0 0.0
  %345 = vmatpush1.msra.mxu0 0.0
  %346 = vmatprep.subr.mxu0 0.0
  %347 = vmatpush1.msra.mxu0 0.0
  %348 = vmatprep.subr.mxu0 0.0
  %349 = vmatpush1.msra.mxu0 0.0
  %350 = vmatprep.subr.mxu0 0.0
  %351 = vmatpush1.msra.mxu0 0.0
  %352 = vmatprep.subr.mxu0 0.0
  %353 = vmatpush1.msra.mxu0 0.0
  %354 = vmatprep.subr.mxu0 0.0
  %355 = vmatpush1.msra.mxu0 0.0
  %356 = vmatprep.subr.mxu0 0.0
  %357 = vmatpush1.msra.mxu0 0.0
  %358 = vmatprep.subr.mxu0 0.0
  %359 = vmatpush1.msra.mxu0 0.0
  %360 = vmatprep.subr.mxu0 0.0
  %361 = vmatpush1.msra.mxu0 0.0
  %362 = vmatprep.subr.mxu0 0.0
  %363 = vmatpush1.msra.mxu0 0.0
  %364 = vmatprep.subr.mxu0 0.0
  %365 = vmatpush1.msra.mxu0 0.0
  %366 = vmatprep.subr.mxu0 0.0
  %367 = vmatpush1.msra.mxu0 0.0
  %368 = vmatprep.subr.mxu0 0.0
  %369 = vmatpush1.msra.mxu0 0.0
  %370 = vmatprep.subr.mxu0 0.0
  %371 = vmatpush1.msra.mxu0 0.0
  %372 = vmatprep.subr.mxu0 0.0
  %373 = vmatpush1.msra.mxu0 0.0
  %374 = vmatprep.subr.mxu0 0.0
  %375 = vmatpush1.msra.mxu0 0.0
  %376 = vmatprep.subr.mxu0 0.0
  %377 = vmatpush1.msra.mxu0 0.0
  %378 = vmatprep.subr.mxu0 0.0
  %379 = vmatpush1.msra.mxu0 0.0
  %380 = vmatprep.subr.mxu0 0.0
  %381 = vmatpush1.msra.mxu0 0.0
  %382 = vmatprep.subr.mxu0 0.0
  %383 = vmatpush1.msra.mxu0 0.0
  %384 = vmatprep.subr.mxu0 0.0
  %385 = vmatpush1.msra.mxu0 0.0
  %386 = vmatprep.subr.mxu0 0.0
  %387 = vmatpush1.msra.mxu0 0.0
  %388 = vmatprep.subr.mxu0 0.0
  %389 = vmatpush1.msra.mxu0 0.0
  %390 = vmatprep.subr.mxu0 0.0
  %391 = vmatpush1.msra.mxu0 0.0
  %392 = vmatprep.subr.mxu0 0.0
  %393 = vmatpush1.msra.mxu0 0.0
  %394 = vmatprep.subr.mxu0 0.0
  %395 = vmatpush1.msra.mxu0 0.0
  %396 = vmatprep.subr.mxu0 0.0
  %397 = vmatpush1.msra.mxu0 0.0
  %398 = vmatprep.mubr.f32.mxu0 0.0
  %399 = vmatmul.mubr.f32.gmra.mrb[0].mxu0 %v326
  %v400 = vpop.f32.mrb[0].mxu0
  %v401 = vadd.f32 %v45, %v400
  %v402 = vpop.f32.mrb[0].mxu0
  %403 = vmatprep.mubr.f32.mxu0 0.0
  %404 = vmatmul.mubr.f32.gmra.mrb[0].mxu0 %v329
  %v405 = vpop.f32.mrb[0].mxu0
  %v406 = vadd.f32 %v46, %v405
  %v407 = vpop.f32.mrb[0].mxu0
  %408 = vdwg.mxu0
  %410 = vset.pattern.permute.xlu0 0
  %411 = vperm.xlu0 %410, %v401
  %v412 = vpop.permute.xlu0 %411
  %415 = vset.pattern.permute.xlu0 0
  %416 = vperm.xlu0 %415, %v406
  %v417 = vpop.permute.xlu0 %416
  %v419 = vadd.f32 %v232, %v412
  %v420 = vadd.f32 %v234, %v412
  %v421 = vadd.f32 %v238, %v417
  %v422 = vadd.f32 %v240, %v417
  %v423 = vxor.u32 %v419, 2147483648
  %v424 = vxor.u32 %v420, 2147483648
  %v425 = vxor.u32 %v421, 2147483648
  %v426 = vxor.u32 %v422, 2147483648
  %v427 = vmul.f32 %v423, 1.442695
  %v428 = vpow.pop %v427
  %v429 = vmul.f32 %v424, 1.442695
  %v430 = vpow.pop %v429
  %v431 = vmul.f32 %v425, 1.442695
  %v432 = vpow.pop %v431
  %v433 = vmul.f32 %v426, 1.442695
  %v434 = vpow.pop %v433
  %v435 = vadd.f32 %v428, 1.0
  %v436 = vadd.f32 %v430, 1.0
  %v437 = vadd.f32 %v432, 1.0
  %v438 = vadd.f32 %v434, 1.0
  %v439 = vrcp.pop %v435
  %v440 = vmul.f32 1.0, %v439
  %v441 = vrcp.pop %v436
  %v442 = vmul.f32 1.0, %v441
  %v443 = vrcp.pop %v437
  %v444 = vmul.f32 1.0, %v443
  %v445 = vrcp.pop %v438
  %v446 = vmul.f32 1.0, %v445
  %v447 = vsub.f32 %v47, %v51
  %v448 = vsub.f32 %v48, %v52
  %v449 = vsub.f32 %v49, %v53
  %v450 = vsub.f32 %v50, %v54
  %v451 = vmul.f32 %v447, %v440
  %v452 = vmul.f32 %v448, %v442
  %v453 = vmul.f32 %v449, %v444
  %v454 = vmul.f32 %v450, %v446
  %v455 = vadd.f32 %v51, %v451
  %v456 = vadd.f32 %v52, %v452
  %v457 = vadd.f32 %v53, %v453
  %v458 = vadd.f32 %v54, %v454
  %v459 = vmul.f32 %v455, 2.0
  %v460 = vmul.f32 %v456, 2.0
  %v461 = vmul.f32 %v457, 2.0
  %v462 = vmul.f32 %v458, 2.0
  %463 = vst [vmem:[%s10] sm:$0xff] %v459
  %464 = vst [vmem:[%s10 + $0x8] sm:$0xff] %v460
  %465 = vst [vmem:[%s10 + $0x10] sm:$0xff] %v461
  %466 = vst [vmem:[%s10 + $0x18] sm:$0xff] %v462
  %s467 = scalar_lea.vmem %s0, 32
  %v468 = vld [vmem:[%s467] sm:$0xff]
  %v469 = vld [vmem:[%s467 + $0x8] sm:$0xff]
  %v470 = vld [vmem:[%s467 + $0x10] sm:$0xff]
  %v471 = vld [vmem:[%s467 + $0x18] sm:$0xff]
  %s472 = scalar_lea.vmem %s1, 32
  %v473 = vld [vmem:[%s472] sm:$0xff]
  %v474 = vld [vmem:[%s472 + $0x8] sm:$0xff]
  %v475 = vld [vmem:[%s472 + $0x10] sm:$0xff]
  %v476 = vld [vmem:[%s472 + $0x18] sm:$0xff]
  %v477 = vadd.f32 %v468, %v473
  %v478 = vadd.f32 %v469, %v474
  %v479 = vadd.f32 %v470, %v475
  %v480 = vadd.f32 %v471, %v476
  %481 = vmatprep.subr.mxu0 %v478
  %482 = vmatpush1.msra.mxu0 %v477
  %483 = vmatprep.subr.mxu0 %v480
  %484 = vmatpush1.msra.mxu0 %v479
  %485 = vmatprep.subr.mxu0 0.0
  %486 = vmatpush1.msra.mxu0 0.0
  %487 = vmatprep.subr.mxu0 0.0
  %488 = vmatpush1.msra.mxu0 0.0
  %489 = vmatprep.subr.mxu0 0.0
  %490 = vmatpush1.msra.mxu0 0.0
  %491 = vmatprep.subr.mxu0 0.0
  %492 = vmatpush1.msra.mxu0 0.0
  %493 = vmatprep.subr.mxu0 0.0
  %494 = vmatpush1.msra.mxu0 0.0
  %495 = vmatprep.subr.mxu0 0.0
  %496 = vmatpush1.msra.mxu0 0.0
  %497 = vmatprep.subr.mxu0 0.0
  %498 = vmatpush1.msra.mxu0 0.0
  %499 = vmatprep.subr.mxu0 0.0
  %500 = vmatpush1.msra.mxu0 0.0
  %501 = vmatprep.subr.mxu0 0.0
  %502 = vmatpush1.msra.mxu0 0.0
  %503 = vmatprep.subr.mxu0 0.0
  %504 = vmatpush1.msra.mxu0 0.0
  %505 = vmatprep.subr.mxu0 0.0
  %506 = vmatpush1.msra.mxu0 0.0
  %507 = vmatprep.subr.mxu0 0.0
  %508 = vmatpush1.msra.mxu0 0.0
  %509 = vmatprep.subr.mxu0 0.0
  %510 = vmatpush1.msra.mxu0 0.0
  %511 = vmatprep.subr.mxu0 0.0
  %512 = vmatpush1.msra.mxu0 0.0
  %513 = vmatprep.subr.mxu0 0.0
  %514 = vmatpush1.msra.mxu0 0.0
  %515 = vmatprep.subr.mxu0 0.0
  %516 = vmatpush1.msra.mxu0 0.0
  %517 = vmatprep.subr.mxu0 0.0
  %518 = vmatpush1.msra.mxu0 0.0
  %519 = vmatprep.subr.mxu0 0.0
  %520 = vmatpush1.msra.mxu0 0.0
  %521 = vmatprep.subr.mxu0 0.0
  %522 = vmatpush1.msra.mxu0 0.0
  %523 = vmatprep.subr.mxu0 0.0
  %524 = vmatpush1.msra.mxu0 0.0
  %525 = vmatprep.subr.mxu0 0.0
  %526 = vmatpush1.msra.mxu0 0.0
  %527 = vmatprep.subr.mxu0 0.0
  %528 = vmatpush1.msra.mxu0 0.0
  %529 = vmatprep.subr.mxu0 0.0
  %530 = vmatpush1.msra.mxu0 0.0
  %531 = vmatprep.subr.mxu0 0.0
  %532 = vmatpush1.msra.mxu0 0.0
  %533 = vmatprep.subr.mxu0 0.0
  %534 = vmatpush1.msra.mxu0 0.0
  %535 = vmatprep.subr.mxu0 0.0
  %536 = vmatpush1.msra.mxu0 0.0
  %537 = vmatprep.subr.mxu0 0.0
  %538 = vmatpush1.msra.mxu0 0.0
  %539 = vmatprep.subr.mxu0 0.0
  %540 = vmatpush1.msra.mxu0 0.0
  %541 = vmatprep.subr.mxu0 0.0
  %542 = vmatpush1.msra.mxu0 0.0
  %543 = vmatprep.subr.mxu0 0.0
  %544 = vmatpush1.msra.mxu0 0.0
  %545 = vmatprep.mubr.f32.mxu0 0.0
  %546 = vmatmul.mubr.f32.gmra.mrb[0].mxu0 %v66
  %v547 = vpop.f32.mrb[0].mxu0
  %v548 = vadd.f32 %v62, %v547
  %v549 = vpop.f32.mrb[0].mxu0
  %v550 = vadd.f32 %v62, %v549
  %551 = vdwg.mxu0
  %v552 = vmax.f32 %v548, 0.0
  %v553 = vmax.f32 %v550, 0.0
  %v555 = vsel %vm158, %v552, 0
  %v558 = vsel %vm158, %v553, 0
  %560 = vmatprep.subr.mxu0 %v558
  %561 = vmatpush1.msra.mxu0 %v555
  %562 = vmatprep.subr.mxu0 0.0
  %563 = vmatpush1.msra.mxu0 0.0
  %564 = vmatprep.subr.mxu0 0.0
  %565 = vmatpush1.msra.mxu0 0.0
  %566 = vmatprep.subr.mxu0 0.0
  %567 = vmatpush1.msra.mxu0 0.0
  %568 = vmatprep.subr.mxu0 0.0
  %569 = vmatpush1.msra.mxu0 0.0
  %570 = vmatprep.subr.mxu0 0.0
  %571 = vmatpush1.msra.mxu0 0.0
  %572 = vmatprep.subr.mxu0 0.0
  %573 = vmatpush1.msra.mxu0 0.0
  %574 = vmatprep.subr.mxu0 0.0
  %575 = vmatpush1.msra.mxu0 0.0
  %576 = vmatprep.subr.mxu0 0.0
  %577 = vmatpush1.msra.mxu0 0.0
  %578 = vmatprep.subr.mxu0 0.0
  %579 = vmatpush1.msra.mxu0 0.0
  %580 = vmatprep.subr.mxu0 0.0
  %581 = vmatpush1.msra.mxu0 0.0
  %582 = vmatprep.subr.mxu0 0.0
  %583 = vmatpush1.msra.mxu0 0.0
  %584 = vmatprep.subr.mxu0 0.0
  %585 = vmatpush1.msra.mxu0 0.0
  %586 = vmatprep.subr.mxu0 0.0
  %587 = vmatpush1.msra.mxu0 0.0
  %588 = vmatprep.subr.mxu0 0.0
  %589 = vmatpush1.msra.mxu0 0.0
  %590 = vmatprep.subr.mxu0 0.0
  %591 = vmatpush1.msra.mxu0 0.0
  %592 = vmatprep.subr.mxu0 0.0
  %593 = vmatpush1.msra.mxu0 0.0
  %594 = vmatprep.subr.mxu0 0.0
  %595 = vmatpush1.msra.mxu0 0.0
  %596 = vmatprep.subr.mxu0 0.0
  %597 = vmatpush1.msra.mxu0 0.0
  %598 = vmatprep.subr.mxu0 0.0
  %599 = vmatpush1.msra.mxu0 0.0
  %600 = vmatprep.subr.mxu0 0.0
  %601 = vmatpush1.msra.mxu0 0.0
  %602 = vmatprep.subr.mxu0 0.0
  %603 = vmatpush1.msra.mxu0 0.0
  %604 = vmatprep.subr.mxu0 0.0
  %605 = vmatpush1.msra.mxu0 0.0
  %606 = vmatprep.subr.mxu0 0.0
  %607 = vmatpush1.msra.mxu0 0.0
  %608 = vmatprep.subr.mxu0 0.0
  %609 = vmatpush1.msra.mxu0 0.0
  %610 = vmatprep.subr.mxu0 0.0
  %611 = vmatpush1.msra.mxu0 0.0
  %612 = vmatprep.subr.mxu0 0.0
  %613 = vmatpush1.msra.mxu0 0.0
  %614 = vmatprep.subr.mxu0 0.0
  %615 = vmatpush1.msra.mxu0 0.0
  %616 = vmatprep.subr.mxu0 0.0
  %617 = vmatpush1.msra.mxu0 0.0
  %618 = vmatprep.subr.mxu0 0.0
  %619 = vmatpush1.msra.mxu0 0.0
  %620 = vmatprep.subr.mxu0 0.0
  %621 = vmatpush1.msra.mxu0 0.0
  %622 = vmatprep.subr.mxu0 0.0
  %623 = vmatpush1.msra.mxu0 0.0
  %624 = vmatprep.mubr.f32.mxu0 0.0
  %625 = vmatmul.mubr.f32.gmra.mrb[0].mxu0 %v153
  %v626 = vpop.f32.mrb[0].mxu0
  %v627 = vadd.f32 %v144, %v626
  %v628 = vpop.f32.mrb[0].mxu0
  %v629 = vadd.f32 %v144, %v628
  %630 = vmatprep.mubr.f32.mxu0 0.0
  %631 = vmatmul.mubr.f32.gmra.mrb[0].mxu0 %v156
  %v632 = vpop.f32.mrb[0].mxu0
  %v633 = vadd.f32 %v149, %v632
  %v634 = vpop.f32.mrb[0].mxu0
  %v635 = vadd.f32 %v149, %v634
  %636 = vdwg.mxu0
  %v637 = vadd.f32 %v477, %v478
  %638 = vadd.xlane.f32.xlu0 %v637
  %v639 = vpop.xlane.xlu0 %638
  %v640 = vadd.f32 %v479, %v480
  %641 = vadd.xlane.f32.xlu0 %v640
  %v642 = vpop.xlane.xlu0 %641
  %v643 = vmul.f32 %v639, %v248
  %v644 = vmul.f32 %v642, %v248
  %645 = vmatprep.subr.mxu0 0.0
  %646 = vmatpush1.msra.mxu0 %v643
  %647 = vmatprep.subr.mxu0 0.0
  %648 = vmatpush1.msra.mxu0 %v644
  %649 = vmatprep.subr.mxu0 0.0
  %650 = vmatpush1.msra.mxu0 0.0
  %651 = vmatprep.subr.mxu0 0.0
  %652 = vmatpush1.msra.mxu0 0.0
  %653 = vmatprep.subr.mxu0 0.0
  %654 = vmatpush1.msra.mxu0 0.0
  %655 = vmatprep.subr.mxu0 0.0
  %656 = vmatpush1.msra.mxu0 0.0
  %657 = vmatprep.subr.mxu0 0.0
  %658 = vmatpush1.msra.mxu0 0.0
  %659 = vmatprep.subr.mxu0 0.0
  %660 = vmatpush1.msra.mxu0 0.0
  %661 = vmatprep.subr.mxu0 0.0
  %662 = vmatpush1.msra.mxu0 0.0
  %663 = vmatprep.subr.mxu0 0.0
  %664 = vmatpush1.msra.mxu0 0.0
  %665 = vmatprep.subr.mxu0 0.0
  %666 = vmatpush1.msra.mxu0 0.0
  %667 = vmatprep.subr.mxu0 0.0
  %668 = vmatpush1.msra.mxu0 0.0
  %669 = vmatprep.subr.mxu0 0.0
  %670 = vmatpush1.msra.mxu0 0.0
  %671 = vmatprep.subr.mxu0 0.0
  %672 = vmatpush1.msra.mxu0 0.0
  %673 = vmatprep.subr.mxu0 0.0
  %674 = vmatpush1.msra.mxu0 0.0
  %675 = vmatprep.subr.mxu0 0.0
  %676 = vmatpush1.msra.mxu0 0.0
  %677 = vmatprep.subr.mxu0 0.0
  %678 = vmatpush1.msra.mxu0 0.0
  %679 = vmatprep.subr.mxu0 0.0
  %680 = vmatpush1.msra.mxu0 0.0
  %681 = vmatprep.subr.mxu0 0.0
  %682 = vmatpush1.msra.mxu0 0.0
  %683 = vmatprep.subr.mxu0 0.0
  %684 = vmatpush1.msra.mxu0 0.0
  %685 = vmatprep.subr.mxu0 0.0
  %686 = vmatpush1.msra.mxu0 0.0
  %687 = vmatprep.subr.mxu0 0.0
  %688 = vmatpush1.msra.mxu0 0.0
  %689 = vmatprep.subr.mxu0 0.0
  %690 = vmatpush1.msra.mxu0 0.0
  %691 = vmatprep.subr.mxu0 0.0
  %692 = vmatpush1.msra.mxu0 0.0
  %693 = vmatprep.subr.mxu0 0.0
  %694 = vmatpush1.msra.mxu0 0.0
  %695 = vmatprep.subr.mxu0 0.0
  %696 = vmatpush1.msra.mxu0 0.0
  %697 = vmatprep.subr.mxu0 0.0
  %698 = vmatpush1.msra.mxu0 0.0
  %699 = vmatprep.subr.mxu0 0.0
  %700 = vmatpush1.msra.mxu0 0.0
  %701 = vmatprep.subr.mxu0 0.0
  %702 = vmatpush1.msra.mxu0 0.0
  %703 = vmatprep.subr.mxu0 0.0
  %704 = vmatpush1.msra.mxu0 0.0
  %705 = vmatprep.subr.mxu0 0.0
  %706 = vmatpush1.msra.mxu0 0.0
  %707 = vmatprep.subr.mxu0 0.0
  %708 = vmatpush1.msra.mxu0 0.0
  %709 = vmatprep.mubr.f32.mxu0 0.0
  %710 = vmatmul.mubr.f32.gmra.mrb[0].mxu0 %v252
  %v711 = vpop.f32.mrb[0].mxu0
  %v712 = vadd.f32 %v42, %v711
  %v713 = vpop.f32.mrb[0].mxu0
  %714 = vdwg.mxu0
  %v715 = vmax.f32 %v712, 0.0
  %v717 = vsel %vm158, %v715, 0
  %719 = vmatprep.subr.mxu0 0.0
  %720 = vmatpush1.msra.mxu0 %v717
  %721 = vmatprep.subr.mxu0 0.0
  %722 = vmatpush1.msra.mxu0 0.0
  %723 = vmatprep.subr.mxu0 0.0
  %724 = vmatpush1.msra.mxu0 0.0
  %725 = vmatprep.subr.mxu0 0.0
  %726 = vmatpush1.msra.mxu0 0.0
  %727 = vmatprep.subr.mxu0 0.0
  %728 = vmatpush1.msra.mxu0 0.0
  %729 = vmatprep.subr.mxu0 0.0
  %730 = vmatpush1.msra.mxu0 0.0
  %731 = vmatprep.subr.mxu0 0.0
  %732 = vmatpush1.msra.mxu0 0.0
  %733 = vmatprep.subr.mxu0 0.0
  %734 = vmatpush1.msra.mxu0 0.0
  %735 = vmatprep.subr.mxu0 0.0
  %736 = vmatpush1.msra.mxu0 0.0
  %737 = vmatprep.subr.mxu0 0.0
  %738 = vmatpush1.msra.mxu0 0.0
  %739 = vmatprep.subr.mxu0 0.0
  %740 = vmatpush1.msra.mxu0 0.0
  %741 = vmatprep.subr.mxu0 0.0
  %742 = vmatpush1.msra.mxu0 0.0
  %743 = vmatprep.subr.mxu0 0.0
  %744 = vmatpush1.msra.mxu0 0.0
  %745 = vmatprep.subr.mxu0 0.0
  %746 = vmatpush1.msra.mxu0 0.0
  %747 = vmatprep.subr.mxu0 0.0
  %748 = vmatpush1.msra.mxu0 0.0
  %749 = vmatprep.subr.mxu0 0.0
  %750 = vmatpush1.msra.mxu0 0.0
  %751 = vmatprep.subr.mxu0 0.0
  %752 = vmatpush1.msra.mxu0 0.0
  %753 = vmatprep.subr.mxu0 0.0
  %754 = vmatpush1.msra.mxu0 0.0
  %755 = vmatprep.subr.mxu0 0.0
  %756 = vmatpush1.msra.mxu0 0.0
  %757 = vmatprep.subr.mxu0 0.0
  %758 = vmatpush1.msra.mxu0 0.0
  %759 = vmatprep.subr.mxu0 0.0
  %760 = vmatpush1.msra.mxu0 0.0
  %761 = vmatprep.subr.mxu0 0.0
  %762 = vmatpush1.msra.mxu0 0.0
  %763 = vmatprep.subr.mxu0 0.0
  %764 = vmatpush1.msra.mxu0 0.0
  %765 = vmatprep.subr.mxu0 0.0
  %766 = vmatpush1.msra.mxu0 0.0
  %767 = vmatprep.subr.mxu0 0.0
  %768 = vmatpush1.msra.mxu0 0.0
  %769 = vmatprep.subr.mxu0 0.0
  %770 = vmatpush1.msra.mxu0 0.0
  %771 = vmatprep.subr.mxu0 0.0
  %772 = vmatpush1.msra.mxu0 0.0
  %773 = vmatprep.subr.mxu0 0.0
  %774 = vmatpush1.msra.mxu0 0.0
  %775 = vmatprep.subr.mxu0 0.0
  %776 = vmatpush1.msra.mxu0 0.0
  %777 = vmatprep.subr.mxu0 0.0
  %778 = vmatpush1.msra.mxu0 0.0
  %779 = vmatprep.subr.mxu0 0.0
  %780 = vmatpush1.msra.mxu0 0.0
  %781 = vmatprep.subr.mxu0 0.0
  %782 = vmatpush1.msra.mxu0 0.0
  %783 = vmatprep.mubr.f32.mxu0 0.0
  %784 = vmatmul.mubr.f32.gmra.mrb[0].mxu0 %v326
  %v785 = vpop.f32.mrb[0].mxu0
  %v786 = vadd.f32 %v45, %v785
  %v787 = vpop.f32.mrb[0].mxu0
  %788 = vmatprep.mubr.f32.mxu0 0.0
  %789 = vmatmul.mubr.f32.gmra.mrb[0].mxu0 %v329
  %v790 = vpop.f32.mrb[0].mxu0
  %v791 = vadd.f32 %v46, %v790
  %v792 = vpop.f32.mrb[0].mxu0
  %793 = vdwg.mxu0
  %795 = vset.pattern.permute.xlu0 0
  %796 = vperm.xlu0 %795, %v786
  %v797 = vpop.permute.xlu0 %796
  %800 = vset.pattern.permute.xlu0 0
  %801 = vperm.xlu0 %800, %v791
  %v802 = vpop.permute.xlu0 %801
  %v804 = vadd.f32 %v627, %v797
  %v805 = vadd.f32 %v629, %v797
  %v806 = vadd.f32 %v633, %v802
  %v807 = vadd.f32 %v635, %v802
  %v808 = vxor.u32 %v804, 2147483648
  %v809 = vxor.u32 %v805, 2147483648
  %v810 = vxor.u32 %v806, 2147483648
  %v811 = vxor.u32 %v807, 2147483648
  %v812 = vmul.f32 %v808, 1.442695
  %v813 = vpow.pop %v812
  %v814 = vmul.f32 %v809, 1.442695
  %v815 = vpow.pop %v814
  %v816 = vmul.f32 %v810, 1.442695
  %v817 = vpow.pop %v816
  %v818 = vmul.f32 %v811, 1.442695
  %v819 = vpow.pop %v818
  %v820 = vadd.f32 %v813, 1.0
  %v821 = vadd.f32 %v815, 1.0
  %v822 = vadd.f32 %v817, 1.0
  %v823 = vadd.f32 %v819, 1.0
  %v824 = vrcp.pop %v820
  %v825 = vmul.f32 1.0, %v824
  %v826 = vrcp.pop %v821
  %v827 = vmul.f32 1.0, %v826
  %v828 = vrcp.pop %v822
  %v829 = vmul.f32 1.0, %v828
  %v830 = vrcp.pop %v823
  %v831 = vmul.f32 1.0, %v830
  %v832 = vsub.f32 %v468, %v473
  %v833 = vsub.f32 %v469, %v474
  %v834 = vsub.f32 %v470, %v475
  %v835 = vsub.f32 %v471, %v476
  %v836 = vmul.f32 %v832, %v825
  %v837 = vmul.f32 %v833, %v827
  %v838 = vmul.f32 %v834, %v829
  %v839 = vmul.f32 %v835, %v831
  %v840 = vadd.f32 %v473, %v836
  %v841 = vadd.f32 %v474, %v837
  %v842 = vadd.f32 %v475, %v838
  %v843 = vadd.f32 %v476, %v839
  %v844 = vmul.f32 %v840, 2.0
  %v845 = vmul.f32 %v841, 2.0
  %v846 = vmul.f32 %v842, 2.0
  %v847 = vmul.f32 %v843, 2.0
  %s848 = scalar_lea.vmem %s10, 32
  %849 = vst [vmem:[%s848] sm:$0xff] %v844
  %850 = vst [vmem:[%s848 + $0x8] sm:$0xff] %v845
  %851 = vst [vmem:[%s848 + $0x10] sm:$0xff] %v846
  %852 = vst [vmem:[%s848 + $0x18] sm:$0xff] %v847
  // Predicated region
  $region42: #{aff_forward.1} parent=0 // pred_check
    _
  $region43: #{aff_forward.1} parent=0 // pred_check_branch
    %854 = sbr.rel (0) target = $region45
  $region44: #{aff_forward.1} parent=0 // pred_region
    _
  $region45: #{aff_forward.1} parent=0 // pred_fallthru
    _
  // Predicated region
  $region46: #{aff_forward.1} parent=0 // pred_check
    _
  $region47: #{aff_forward.1} parent=0 // pred_check_branch
    %856 = sbr.rel (0) target = $region49
  $region48: #{aff_forward.1} parent=0 // pred_region
    _
  $region49: #{aff_forward.1} parent=0 // pred_fallthru
    _

</llo_original>
